<compile_context>
chip_gen: v7x
topology: tpu7x:2x2x1
jax: 0.10.0
libtpu: 0.0.40
codegen_flags: <defaults>
</compile_context>

<pallas_src>
import jax
import jax.numpy as jnp
import numpy as np
from jax import lax
from jax.experimental import pallas as pl
from jax.experimental.pallas import tpu as pltpu


def _lstm_kernel(x_ref, w_ref, out_ref):
    """Single-invocation LSTM forward.

    x_ref   : (seq, in)          f32  activations (batch=1, squeezed)
    w_ref   : (in + H + 1, 4H)   f32  packed [W_ih^T ; W_hh^T ; (b_ih + b_hh)]
    out_ref : (seq + 1, H)       f32  rows 0..seq-1 = hidden states, row seq = c_n
    """
    seq_len, in_size = x_ref.shape
    H = out_ref.shape[-1]

    # Static views into the single packed weight block (one input DMA for all params).
    w_ih = w_ref[0:in_size, :]                      # (in, 4H)
    w_hh = w_ref[in_size:in_size + H, :]            # (H, 4H)
    bias = w_ref[in_size + H:in_size + H + 1, :]    # (1, 4H)

    # Hoisted (non-recurrent) input projection for ALL timesteps: one MXU push.
    # (seq, in) @ (in, 4H) + bias -> (seq, 4H), gate order [i, f, g, o].
    gx = jnp.dot(x_ref[...], w_ih, preferred_element_type=jnp.float32) + bias

    # nn.LSTM with hidden=None starts from zeros.
    h = jnp.zeros((1, H), jnp.float32)
    c = jnp.zeros((1, H), jnp.float32)

    # seq_len is tiny and static -> fully unrolled at trace time; only the
    # unavoidable h @ W_hh latency remains on the serial critical path.
    for t in range(seq_len):
        gates = gx[t:t + 1, :] + jnp.dot(h, w_hh,
                                         preferred_element_type=jnp.float32)
        # Two EUP passes over the whole (1, 4H) vreg instead of four sliced ones.
        sig = jax.nn.sigmoid(gates)
        th = jnp.tanh(gates)
        i_g = sig[:, 0 * H:1 * H]
        f_g = sig[:, 1 * H:2 * H]
        g_g = th[:, 2 * H:3 * H]
        o_g = sig[:, 3 * H:4 * H]
        c = f_g * c + i_g * g_g
        h = o_g * jnp.tanh(c)
        # Per-step store into the resident VMEM output block (idle vst slot);
        # the HBM writeback still happens exactly once at kernel exit.
        out_ref[t:t + 1, :] = h.astype(out_ref.dtype)

    # Fold c_n into the same (single) output buffer: last row.
    out_ref[seq_len:seq_len + 1, :] = c.astype(out_ref.dtype)


def pack_lstm_params(w_ih, w_hh, b_ih, b_hh):
    """PyTorch layout (4H,in)/(4H,H)/(4H,)/(4H,) -> single (in+H+1, 4H) block."""
    return jnp.concatenate([w_ih.T, w_hh.T, (b_ih + b_hh)[None, :]], axis=0)


def encoder_lstm_forward(x, w_pack, hidden_size):
    """x: (seq_len, 1, input_size) f32.  Returns (output, (h_n, c_n)) in PyTorch layout."""
    seq_len, batch, input_size = x.shape
    assert batch == 1
    H = hidden_size
    assert w_pack.shape == (input_size + H + 1, 4 * H)

    x2d = x[:, 0, :]  # (seq_len, input_size) -- sentence.view(len, 1, -1) squeezed

    out = pl.pallas_call(
        _lstm_kernel,
        out_shape=jax.ShapeDtypeStruct((seq_len + 1, H), x.dtype),
        in_specs=[
            pl.BlockSpec(memory_space=pltpu.MemorySpace.VMEM),
            pl.BlockSpec(memory_space=pltpu.MemorySpace.VMEM),
        ],
        out_specs=pl.BlockSpec(memory_space=pltpu.MemorySpace.VMEM),
    )(x2d, w_pack)

    # Back to PyTorch nn.LSTM layout: (seq, 1, H), (1, 1, H), (1, 1, H).
    output = out[:seq_len, None, :]
    h_n = out[seq_len - 1][None, None, :]   # h_n == output[-1] for 1-layer unidirectional
    c_n = out[seq_len][None, None, :]
    return output, (h_n, c_n)


def _lstm_reference(x, w_ih, w_hh, b_ih, b_hh):
    """Pure-JAX reference (PyTorch nn.LSTM semantics, gate order i,f,g,o)."""
    H = w_hh.shape[1]
    w_ih_t, w_hh_t = w_ih.T, w_hh.T
    bias = (b_ih + b_hh)[None, :]

    def step(carry, x_t):
        h, c = carry
        gates = x_t @ w_ih_t + h @ w_hh_t + bias
        i = jax.nn.sigmoid(gates[:, 0 * H:1 * H])
        f = jax.nn.sigmoid(gates[:, 1 * H:2 * H])
        g = jnp.tanh(gates[:, 2 * H:3 * H])
        o = jax.nn.sigmoid(gates[:, 3 * H:4 * H])
        c_new = f * c + i * g
        h_new = o * jnp.tanh(c_new)
        return (h_new, c_new), h_new[0]

    h0 = jnp.zeros((1, H), jnp.float32)
    c0 = jnp.zeros((1, H), jnp.float32)
    (h_n, c_n), outs = lax.scan(step, (h0, c0), x[:, 0, :][:, None, :])
    return outs[:, None, :], (h_n[None], c_n[None])


if __name__ == "__main__":
    # Shapes implied by the module: seq=8, batch=1 (forced by .view(len, 1, -1)),
    # input_size=32, hidden_size=32 (so 4*hidden = 128, lane-aligned gates).
    SEQ, INPUT, HIDDEN = 8, 32, 32

    key = jax.random.PRNGKey(0)
    k_x, k_wih, k_whh, k_bih, k_bhh = jax.random.split(key, 5)

    # PyTorch LSTM init: U(-1/sqrt(H), 1/sqrt(H)) for all params.
    bound = 1.0 / np.sqrt(HIDDEN)
    w_ih = jax.random.uniform(k_wih, (4 * HIDDEN, INPUT), jnp.float32, -bound, bound)
    w_hh = jax.random.uniform(k_whh, (4 * HIDDEN, HIDDEN), jnp.float32, -bound, bound)
    b_ih = jax.random.uniform(k_bih, (4 * HIDDEN,), jnp.float32, -bound, bound)
    b_hh = jax.random.uniform(k_bhh, (4 * HIDDEN,), jnp.float32, -bound, bound)

    # Single packed parameter block (host-side): (INPUT + HIDDEN + 1, 4H) = (65, 128).
    w_pack = pack_lstm_params(w_ih, w_hh, b_ih, b_hh)

    sentence = jax.random.normal(k_x, (SEQ, INPUT), jnp.float32)
    x = sentence.reshape(SEQ, 1, INPUT)  # sentence.view(len(sentence), 1, -1)

    output, (h_n, c_n) = encoder_lstm_forward(x, w_pack, HIDDEN)
    jax.block_until_ready((output, h_n, c_n))

    # Cross-check against a pure-JAX reference of the same math (tight f32 tolerance).
    ref_out, (ref_h, ref_c) = _lstm_reference(x, w_ih, w_hh, b_ih, b_hh)
    np.testing.assert_allclose(np.asarray(output), np.asarray(ref_out), rtol=1e-4, atol=1e-4)
    np.testing.assert_allclose(np.asarray(h_n), np.asarray(ref_h), rtol=1e-4, atol=1e-4)
    np.testing.assert_allclose(np.asarray(c_n), np.asarray(ref_c), rtol=1e-4, atol=1e-4)

    print("KERNEL_OK")
</pallas_src>

<mosaic_0001>
module attributes {stable_mosaic.version = 11 : i64} {
  func.func @_lstm_kernel(%arg0: memref<8x32xf32, #tpu.memory_space<vmem>>, %arg1: memref<65x128xf32, #tpu.memory_space<vmem>>, %arg2: memref<9x32xf32, #tpu.memory_space<vmem>>) attributes {dimension_semantics = [], scalar_prefetch = 0 : i64, scratch_operands = 0 : i64, tpu.core_type = #tpu.core_type<tc>} {
    %c0 = arith.constant 0 : index
    %c0_0 = arith.constant 0 : index
    %0 = vector.load %arg1[%c0, %c0_0] : memref<65x128xf32, #tpu.memory_space<vmem>>, vector<32x128xf32>
    %c32 = arith.constant 32 : index
    %c0_1 = arith.constant 0 : index
    %1 = vector.load %arg1[%c32, %c0_1] : memref<65x128xf32, #tpu.memory_space<vmem>>, vector<32x128xf32>
    %c64 = arith.constant 64 : index
    %c0_2 = arith.constant 0 : index
    %2 = vector.load %arg1[%c64, %c0_2] : memref<65x128xf32, #tpu.memory_space<vmem>>, vector<1x128xf32>
    %c0_3 = arith.constant 0 : index
    %c0_4 = arith.constant 0 : index
    %3 = vector.load %arg0[%c0_3, %c0_4] : memref<8x32xf32, #tpu.memory_space<vmem>>, vector<8x32xf32>
    %cst = arith.constant dense<0.000000e+00> : vector<8x128xf32>
    %4 = tpu.matmul %3, %0, %cst {dimension_numbers = #tpu.dot_dimension_numbers<[1], [0], [0], [1], [0, 0, 1, 1], [], []>} : vector<8x32xf32>, vector<32x128xf32>, vector<8x128xf32> -> vector<8x128xf32>
    %5 = vector.broadcast %2 : vector<1x128xf32> to vector<8x128xf32>
    %6 = arith.addf %4, %5 : vector<8x128xf32>
    %cst_5 = arith.constant 0.000000e+00 : f32
    %7 = vector.broadcast %cst_5 : f32 to vector<1x32xf32>
    %cst_6 = arith.constant 0.000000e+00 : f32
    %8 = vector.broadcast %cst_6 : f32 to vector<1x32xf32>
    %9 = vector.extract_strided_slice %6 {offsets = [0, 0], sizes = [1, 128], strides = [1, 1]} : vector<8x128xf32> to vector<1x128xf32>
    %cst_7 = arith.constant dense<0.000000e+00> : vector<1x128xf32>
    %10 = tpu.matmul %7, %1, %cst_7 {dimension_numbers = #tpu.dot_dimension_numbers<[1], [0], [0], [1], [0, 0, 1, 1], [], []>} : vector<1x32xf32>, vector<32x128xf32>, vector<1x128xf32> -> vector<1x128xf32>
    %11 = arith.addf %9, %10 : vector<1x128xf32>
    %12 = arith.negf %11 : vector<1x128xf32>
    %13 = math.exp %12 : vector<1x128xf32>
    %cst_8 = arith.constant 1.000000e+00 : f32
    %14 = vector.broadcast %cst_8 : f32 to vector<1x128xf32>
    %15 = arith.addf %14, %13 : vector<1x128xf32>
    %16 = arith.divf %14, %15 : vector<1x128xf32>
    %17 = math.tanh %11 : vector<1x128xf32>
    %18 = vector.extract_strided_slice %16 {offsets = [0, 0], sizes = [1, 32], strides = [1, 1]} : vector<1x128xf32> to vector<1x32xf32>
    %19 = vector.extract_strided_slice %16 {offsets = [0, 32], sizes = [1, 32], strides = [1, 1]} : vector<1x128xf32> to vector<1x32xf32>
    %20 = vector.extract_strided_slice %17 {offsets = [0, 64], sizes = [1, 32], strides = [1, 1]} : vector<1x128xf32> to vector<1x32xf32>
    %21 = vector.extract_strided_slice %16 {offsets = [0, 96], sizes = [1, 32], strides = [1, 1]} : vector<1x128xf32> to vector<1x32xf32>
    %22 = arith.mulf %19, %8 : vector<1x32xf32>
    %23 = arith.mulf %18, %20 : vector<1x32xf32>
    %24 = arith.addf %22, %23 : vector<1x32xf32>
    %25 = math.tanh %24 : vector<1x32xf32>
    %26 = arith.mulf %21, %25 : vector<1x32xf32>
    %c0_9 = arith.constant 0 : index
    %c0_10 = arith.constant 0 : index
    %27 = vector.load %arg2[%c0_9, %c0_10] : memref<9x32xf32, #tpu.memory_space<vmem>>, vector<1x32xf32>
    tpu.vector_store %arg2[%c0_9, %c0_10], %26 {strides = array<i32>} : memref<9x32xf32, #tpu.memory_space<vmem>>, vector<1x32xf32>,
    %28 = vector.extract_strided_slice %6 {offsets = [1, 0], sizes = [1, 128], strides = [1, 1]} : vector<8x128xf32> to vector<1x128xf32>
    %cst_11 = arith.constant dense<0.000000e+00> : vector<1x128xf32>
    %29 = tpu.matmul %26, %1, %cst_11 {dimension_numbers = #tpu.dot_dimension_numbers<[1], [0], [0], [1], [0, 0, 1, 1], [], []>} : vector<1x32xf32>, vector<32x128xf32>, vector<1x128xf32> -> vector<1x128xf32>
    %30 = arith.addf %28, %29 : vector<1x128xf32>
    %31 = arith.negf %30 : vector<1x128xf32>
    %32 = math.exp %31 : vector<1x128xf32>
    %cst_12 = arith.constant 1.000000e+00 : f32
    %33 = vector.broadcast %cst_12 : f32 to vector<1x128xf32>
    %34 = arith.addf %33, %32 : vector<1x128xf32>
    %35 = arith.divf %33, %34 : vector<1x128xf32>
    %36 = math.tanh %30 : vector<1x128xf32>
    %37 = vector.extract_strided_slice %35 {offsets = [0, 0], sizes = [1, 32], strides = [1, 1]} : vector<1x128xf32> to vector<1x32xf32>
    %38 = vector.extract_strided_slice %35 {offsets = [0, 32], sizes = [1, 32], strides = [1, 1]} : vector<1x128xf32> to vector<1x32xf32>
    %39 = vector.extract_strided_slice %36 {offsets = [0, 64], sizes = [1, 32], strides = [1, 1]} : vector<1x128xf32> to vector<1x32xf32>
    %40 = vector.extract_strided_slice %35 {offsets = [0, 96], sizes = [1, 32], strides = [1, 1]} : vector<1x128xf32> to vector<1x32xf32>
    %41 = arith.mulf %38, %24 : vector<1x32xf32>
    %42 = arith.mulf %37, %39 : vector<1x32xf32>
    %43 = arith.addf %41, %42 : vector<1x32xf32>
    %44 = math.tanh %43 : vector<1x32xf32>
    %45 = arith.mulf %40, %44 : vector<1x32xf32>
    %c1 = arith.constant 1 : index
    %c0_13 = arith.constant 0 : index
    %46 = vector.load %arg2[%c1, %c0_13] : memref<9x32xf32, #tpu.memory_space<vmem>>, vector<1x32xf32>
    tpu.vector_store %arg2[%c1, %c0_13], %45 {strides = array<i32>} : memref<9x32xf32, #tpu.memory_space<vmem>>, vector<1x32xf32>,
    %47 = vector.extract_strided_slice %6 {offsets = [2, 0], sizes = [1, 128], strides = [1, 1]} : vector<8x128xf32> to vector<1x128xf32>
    %cst_14 = arith.constant dense<0.000000e+00> : vector<1x128xf32>
    %48 = tpu.matmul %45, %1, %cst_14 {dimension_numbers = #tpu.dot_dimension_numbers<[1], [0], [0], [1], [0, 0, 1, 1], [], []>} : vector<1x32xf32>, vector<32x128xf32>, vector<1x128xf32> -> vector<1x128xf32>
    %49 = arith.addf %47, %48 : vector<1x128xf32>
    %50 = arith.negf %49 : vector<1x128xf32>
    %51 = math.exp %50 : vector<1x128xf32>
    %cst_15 = arith.constant 1.000000e+00 : f32
    %52 = vector.broadcast %cst_15 : f32 to vector<1x128xf32>
    %53 = arith.addf %52, %51 : vector<1x128xf32>
    %54 = arith.divf %52, %53 : vector<1x128xf32>
    %55 = math.tanh %49 : vector<1x128xf32>
    %56 = vector.extract_strided_slice %54 {offsets = [0, 0], sizes = [1, 32], strides = [1, 1]} : vector<1x128xf32> to vector<1x32xf32>
    %57 = vector.extract_strided_slice %54 {offsets = [0, 32], sizes = [1, 32], strides = [1, 1]} : vector<1x128xf32> to vector<1x32xf32>
    %58 = vector.extract_strided_slice %55 {offsets = [0, 64], sizes = [1, 32], strides = [1, 1]} : vector<1x128xf32> to vector<1x32xf32>
    %59 = vector.extract_strided_slice %54 {offsets = [0, 96], sizes = [1, 32], strides = [1, 1]} : vector<1x128xf32> to vector<1x32xf32>
    %60 = arith.mulf %57, %43 : vector<1x32xf32>
    %61 = arith.mulf %56, %58 : vector<1x32xf32>
    %62 = arith.addf %60, %61 : vector<1x32xf32>
    %63 = math.tanh %62 : vector<1x32xf32>
    %64 = arith.mulf %59, %63 : vector<1x32xf32>
    %c2 = arith.constant 2 : index
    %c0_16 = arith.constant 0 : index
    %65 = vector.load %arg2[%c2, %c0_16] : memref<9x32xf32, #tpu.memory_space<vmem>>, vector<1x32xf32>
    tpu.vector_store %arg2[%c2, %c0_16], %64 {strides = array<i32>} : memref<9x32xf32, #tpu.memory_space<vmem>>, vector<1x32xf32>,
    %66 = vector.extract_strided_slice %6 {offsets = [3, 0], sizes = [1, 128], strides = [1, 1]} : vector<8x128xf32> to vector<1x128xf32>
    %cst_17 = arith.constant dense<0.000000e+00> : vector<1x128xf32>
    %67 = tpu.matmul %64, %1, %cst_17 {dimension_numbers = #tpu.dot_dimension_numbers<[1], [0], [0], [1], [0, 0, 1, 1], [], []>} : vector<1x32xf32>, vector<32x128xf32>, vector<1x128xf32> -> vector<1x128xf32>
    %68 = arith.addf %66, %67 : vector<1x128xf32>
    %69 = arith.negf %68 : vector<1x128xf32>
    %70 = math.exp %69 : vector<1x128xf32>
    %cst_18 = arith.constant 1.000000e+00 : f32
    %71 = vector.broadcast %cst_18 : f32 to vector<1x128xf32>
    %72 = arith.addf %71, %70 : vector<1x128xf32>
    %73 = arith.divf %71, %72 : vector<1x128xf32>
    %74 = math.tanh %68 : vector<1x128xf32>
    %75 = vector.extract_strided_slice %73 {offsets = [0, 0], sizes = [1, 32], strides = [1, 1]} : vector<1x128xf32> to vector<1x32xf32>
    %76 = vector.extract_strided_slice %73 {offsets = [0, 32], sizes = [1, 32], strides = [1, 1]} : vector<1x128xf32> to vector<1x32xf32>
    %77 = vector.extract_strided_slice %74 {offsets = [0, 64], sizes = [1, 32], strides = [1, 1]} : vector<1x128xf32> to vector<1x32xf32>
    %78 = vector.extract_strided_slice %73 {offsets = [0, 96], sizes = [1, 32], strides = [1, 1]} : vector<1x128xf32> to vector<1x32xf32>
    %79 = arith.mulf %76, %62 : vector<1x32xf32>
    %80 = arith.mulf %75, %77 : vector<1x32xf32>
    %81 = arith.addf %79, %80 : vector<1x32xf32>
    %82 = math.tanh %81 : vector<1x32xf32>
    %83 = arith.mulf %78, %82 : vector<1x32xf32>
    %c3 = arith.constant 3 : index
    %c0_19 = arith.constant 0 : index
    %84 = vector.load %arg2[%c3, %c0_19] : memref<9x32xf32, #tpu.memory_space<vmem>>, vector<1x32xf32>
    tpu.vector_store %arg2[%c3, %c0_19], %83 {strides = array<i32>} : memref<9x32xf32, #tpu.memory_space<vmem>>, vector<1x32xf32>,
    %85 = vector.extract_strided_slice %6 {offsets = [4, 0], sizes = [1, 128], strides = [1, 1]} : vector<8x128xf32> to vector<1x128xf32>
    %cst_20 = arith.constant dense<0.000000e+00> : vector<1x128xf32>
    %86 = tpu.matmul %83, %1, %cst_20 {dimension_numbers = #tpu.dot_dimension_numbers<[1], [0], [0], [1], [0, 0, 1, 1], [], []>} : vector<1x32xf32>, vector<32x128xf32>, vector<1x128xf32> -> vector<1x128xf32>
    %87 = arith.addf %85, %86 : vector<1x128xf32>
    %88 = arith.negf %87 : vector<1x128xf32>
    %89 = math.exp %88 : vector<1x128xf32>
    %cst_21 = arith.constant 1.000000e+00 : f32
    %90 = vector.broadcast %cst_21 : f32 to vector<1x128xf32>
    %91 = arith.addf %90, %89 : vector<1x128xf32>
    %92 = arith.divf %90, %91 : vector<1x128xf32>
    %93 = math.tanh %87 : vector<1x128xf32>
    %94 = vector.extract_strided_slice %92 {offsets = [0, 0], sizes = [1, 32], strides = [1, 1]} : vector<1x128xf32> to vector<1x32xf32>
    %95 = vector.extract_strided_slice %92 {offsets = [0, 32], sizes = [1, 32], strides = [1, 1]} : vector<1x128xf32> to vector<1x32xf32>
    %96 = vector.extract_strided_slice %93 {offsets = [0, 64], sizes = [1, 32], strides = [1, 1]} : vector<1x128xf32> to vector<1x32xf32>
    %97 = vector.extract_strided_slice %92 {offsets = [0, 96], sizes = [1, 32], strides = [1, 1]} : vector<1x128xf32> to vector<1x32xf32>
    %98 = arith.mulf %95, %81 : vector<1x32xf32>
    %99 = arith.mulf %94, %96 : vector<1x32xf32>
    %100 = arith.addf %98, %99 : vector<1x32xf32>
    %101 = math.tanh %100 : vector<1x32xf32>
    %102 = arith.mulf %97, %101 : vector<1x32xf32>
    %c4 = arith.constant 4 : index
    %c0_22 = arith.constant 0 : index
    %103 = vector.load %arg2[%c4, %c0_22] : memref<9x32xf32, #tpu.memory_space<vmem>>, vector<1x32xf32>
    tpu.vector_store %arg2[%c4, %c0_22], %102 {strides = array<i32>} : memref<9x32xf32, #tpu.memory_space<vmem>>, vector<1x32xf32>,
    %104 = vector.extract_strided_slice %6 {offsets = [5, 0], sizes = [1, 128], strides = [1, 1]} : vector<8x128xf32> to vector<1x128xf32>
    %cst_23 = arith.constant dense<0.000000e+00> : vector<1x128xf32>
    %105 = tpu.matmul %102, %1, %cst_23 {dimension_numbers = #tpu.dot_dimension_numbers<[1], [0], [0], [1], [0, 0, 1, 1], [], []>} : vector<1x32xf32>, vector<32x128xf32>, vector<1x128xf32> -> vector<1x128xf32>
    %106 = arith.addf %104, %105 : vector<1x128xf32>
    %107 = arith.negf %106 : vector<1x128xf32>
    %108 = math.exp %107 : vector<1x128xf32>
    %cst_24 = arith.constant 1.000000e+00 : f32
    %109 = vector.broadcast %cst_24 : f32 to vector<1x128xf32>
    %110 = arith.addf %109, %108 : vector<1x128xf32>
    %111 = arith.divf %109, %110 : vector<1x128xf32>
    %112 = math.tanh %106 : vector<1x128xf32>
    %113 = vector.extract_strided_slice %111 {offsets = [0, 0], sizes = [1, 32], strides = [1, 1]} : vector<1x128xf32> to vector<1x32xf32>
    %114 = vector.extract_strided_slice %111 {offsets = [0, 32], sizes = [1, 32], strides = [1, 1]} : vector<1x128xf32> to vector<1x32xf32>
    %115 = vector.extract_strided_slice %112 {offsets = [0, 64], sizes = [1, 32], strides = [1, 1]} : vector<1x128xf32> to vector<1x32xf32>
    %116 = vector.extract_strided_slice %111 {offsets = [0, 96], sizes = [1, 32], strides = [1, 1]} : vector<1x128xf32> to vector<1x32xf32>
    %117 = arith.mulf %114, %100 : vector<1x32xf32>
    %118 = arith.mulf %113, %115 : vector<1x32xf32>
    %119 = arith.addf %117, %118 : vector<1x32xf32>
    %120 = math.tanh %119 : vector<1x32xf32>
    %121 = arith.mulf %116, %120 : vector<1x32xf32>
    %c5 = arith.constant 5 : index
    %c0_25 = arith.constant 0 : index
    %122 = vector.load %arg2[%c5, %c0_25] : memref<9x32xf32, #tpu.memory_space<vmem>>, vector<1x32xf32>
    tpu.vector_store %arg2[%c5, %c0_25], %121 {strides = array<i32>} : memref<9x32xf32, #tpu.memory_space<vmem>>, vector<1x32xf32>,
    %123 = vector.extract_strided_slice %6 {offsets = [6, 0], sizes = [1, 128], strides = [1, 1]} : vector<8x128xf32> to vector<1x128xf32>
    %cst_26 = arith.constant dense<0.000000e+00> : vector<1x128xf32>
    %124 = tpu.matmul %121, %1, %cst_26 {dimension_numbers = #tpu.dot_dimension_numbers<[1], [0], [0], [1], [0, 0, 1, 1], [], []>} : vector<1x32xf32>, vector<32x128xf32>, vector<1x128xf32> -> vector<1x128xf32>
    %125 = arith.addf %123, %124 : vector<1x128xf32>
    %126 = arith.negf %125 : vector<1x128xf32>
    %127 = math.exp %126 : vector<1x128xf32>
    %cst_27 = arith.constant 1.000000e+00 : f32
    %128 = vector.broadcast %cst_27 : f32 to vector<1x128xf32>
    %129 = arith.addf %128, %127 : vector<1x128xf32>
    %130 = arith.divf %128, %129 : vector<1x128xf32>
    %131 = math.tanh %125 : vector<1x128xf32>
    %132 = vector.extract_strided_slice %130 {offsets = [0, 0], sizes = [1, 32], strides = [1, 1]} : vector<1x128xf32> to vector<1x32xf32>
    %133 = vector.extract_strided_slice %130 {offsets = [0, 32], sizes = [1, 32], strides = [1, 1]} : vector<1x128xf32> to vector<1x32xf32>
    %134 = vector.extract_strided_slice %131 {offsets = [0, 64], sizes = [1, 32], strides = [1, 1]} : vector<1x128xf32> to vector<1x32xf32>
    %135 = vector.extract_strided_slice %130 {offsets = [0, 96], sizes = [1, 32], strides = [1, 1]} : vector<1x128xf32> to vector<1x32xf32>
    %136 = arith.mulf %133, %119 : vector<1x32xf32>
    %137 = arith.mulf %132, %134 : vector<1x32xf32>
    %138 = arith.addf %136, %137 : vector<1x32xf32>
    %139 = math.tanh %138 : vector<1x32xf32>
    %140 = arith.mulf %135, %139 : vector<1x32xf32>
    %c6 = arith.constant 6 : index
    %c0_28 = arith.constant 0 : index
    %141 = vector.load %arg2[%c6, %c0_28] : memref<9x32xf32, #tpu.memory_space<vmem>>, vector<1x32xf32>
    tpu.vector_store %arg2[%c6, %c0_28], %140 {strides = array<i32>} : memref<9x32xf32, #tpu.memory_space<vmem>>, vector<1x32xf32>,
    %142 = vector.extract_strided_slice %6 {offsets = [7, 0], sizes = [1, 128], strides = [1, 1]} : vector<8x128xf32> to vector<1x128xf32>
    %cst_29 = arith.constant dense<0.000000e+00> : vector<1x128xf32>
    %143 = tpu.matmul %140, %1, %cst_29 {dimension_numbers = #tpu.dot_dimension_numbers<[1], [0], [0], [1], [0, 0, 1, 1], [], []>} : vector<1x32xf32>, vector<32x128xf32>, vector<1x128xf32> -> vector<1x128xf32>
    %144 = arith.addf %142, %143 : vector<1x128xf32>
    %145 = arith.negf %144 : vector<1x128xf32>
    %146 = math.exp %145 : vector<1x128xf32>
    %cst_30 = arith.constant 1.000000e+00 : f32
    %147 = vector.broadcast %cst_30 : f32 to vector<1x128xf32>
    %148 = arith.addf %147, %146 : vector<1x128xf32>
    %149 = arith.divf %147, %148 : vector<1x128xf32>
    %150 = math.tanh %144 : vector<1x128xf32>
    %151 = vector.extract_strided_slice %149 {offsets = [0, 0], sizes = [1, 32], strides = [1, 1]} : vector<1x128xf32> to vector<1x32xf32>
    %152 = vector.extract_strided_slice %149 {offsets = [0, 32], sizes = [1, 32], strides = [1, 1]} : vector<1x128xf32> to vector<1x32xf32>
    %153 = vector.extract_strided_slice %150 {offsets = [0, 64], sizes = [1, 32], strides = [1, 1]} : vector<1x128xf32> to vector<1x32xf32>
    %154 = vector.extract_strided_slice %149 {offsets = [0, 96], sizes = [1, 32], strides = [1, 1]} : vector<1x128xf32> to vector<1x32xf32>
    %155 = arith.mulf %152, %138 : vector<1x32xf32>
    %156 = arith.mulf %151, %153 : vector<1x32xf32>
    %157 = arith.addf %155, %156 : vector<1x32xf32>
    %158 = math.tanh %157 : vector<1x32xf32>
    %159 = arith.mulf %154, %158 : vector<1x32xf32>
    %c7 = arith.constant 7 : index
    %c0_31 = arith.constant 0 : index
    %160 = vector.load %arg2[%c7, %c0_31] : memref<9x32xf32, #tpu.memory_space<vmem>>, vector<1x32xf32>
    tpu.vector_store %arg2[%c7, %c0_31], %159 {strides = array<i32>} : memref<9x32xf32, #tpu.memory_space<vmem>>, vector<1x32xf32>,
    %c8 = arith.constant 8 : index
    %c0_32 = arith.constant 0 : index
    %161 = vector.load %arg2[%c8, %c0_32] : memref<9x32xf32, #tpu.memory_space<vmem>>, vector<1x32xf32>
    tpu.vector_store %arg2[%c8, %c0_32], %157 {strides = array<i32>} : memref<9x32xf32, #tpu.memory_space<vmem>>, vector<1x32xf32>,
    return
  }
}

</mosaic_0001>

<llo_original>
// kernel: tpu_custom_call.1
$region0: #{tpu_custom_call.1}
  #allocation0 [shape = 'u32[]', space=smem, size = 0x4, offset = 0x4, fixed_abs, tag = 'smem constant byte address 0x4 - core index']
  #allocation1 [shape = 'u32[144,128]{1,0:T(1,128)}', space=vmem, size = 0x12000, scoped, tag = 'internal scratch']
  %s0 = inlined_call_operand.hbm [shape: f32[8,32], index: 0, kind: input, shape index: {}]
  %s1 = inlined_call_operand.hbm [shape: f32[65,128], index: 1, kind: input, shape index: {}]
  %s2 = inlined_call_operand.hbm [shape: f32[9,32], index: 2, kind: output, shape index: {}]
  %s3 = sld [smem:[#allocation0]]
  $region26: #{tpu_custom_call.1} parent=0
    _
  %s5 = ssub.s32 1, %s3
  %s6 = scalar_select 0, %s5, %s3
  $region1: #{tpu_custom_call.1} parent=0
    #allocation2 [shape = 'u8[4096]{0}', space=vmem, size = 0x1000, scoped, tag = 'input window, operand 0, single buffered']
    #allocation3 [shape = 's32[1]{0}', space=sflag, size = 0x4, scoped, tag = 'scoped memory for tpu_custom_call.1']
    #allocation4 [shape = 's32[1]{0}', space=sflag, size = 0x4, scoped, tag = 'scoped memory for tpu_custom_call.1']
    #allocation5 [shape = 'u8[36864]{0}', space=vmem, size = 0x9000, scoped, tag = 'input window, operand 1, single buffered']
    #allocation6 [shape = 's32[1]{0}', space=sflag, size = 0x4, scoped, tag = 'scoped memory for tpu_custom_call.1']
    #allocation7 [shape = 'u8[8192]{0}', space=vmem, size = 0x2000, scoped, tag = 'output window, operand 0, single buffered']
    %7 = vsyncpa [#allocation3], 0
    %8 = vsyncpa [#allocation6], 0
    %9 = vsyncpa [#allocation4], 0
    // Predicated region
    $region2: #{tpu_custom_call.1} parent=1 // pred_check
      _
    $region3: #{tpu_custom_call.1} parent=1 // pred_check_branch
      %11 = sbr.rel (0) target = $region5
    $region4: #{tpu_custom_call.1} parent=1 // pred_region
      %s13 = ssub.s32 128, 128
      %14 = vsyncadd [#allocation3], %s13
      %s16 = sshll.u32 [#allocation2], 4
      %s17 = int_to_ptr.vmem [resolvable:$true] %s16
      %19 = dma.hbm_to_vmem [thread:$0]  %s0, 128, %s17, [#allocation3]
    $region5: #{tpu_custom_call.1} parent=1 // pred_fallthru
      _
    // Predicated region
    $region6: #{tpu_custom_call.1} parent=1 // pred_check
      _
    $region7: #{tpu_custom_call.1} parent=1 // pred_check_branch
      %21 = sbr.rel (0) target = $region9
    $region8: #{tpu_custom_call.1} parent=1 // pred_region
      %s23 = ssub.s32 1152, 1152
      %24 = vsyncadd [#allocation6], %s23
      %s25 = sshll.u32 [#allocation5], 4
      %s26 = int_to_ptr.vmem [resolvable:$true] %s25
      %31 = dma.hbm_to_vmem [thread:$0]  %s1, 1152, %s26, [#allocation6], 128, 128, 8
    $region9: #{tpu_custom_call.1} parent=1 // pred_fallthru
      _
    // Predicated region
    $region10: #{tpu_custom_call.1} parent=1 // pred_check
      _
    $region11: #{tpu_custom_call.1} parent=1 // pred_check_branch
      %33 = sbr.rel (0) target = $region13
    $region12: #{tpu_custom_call.1} parent=1 // pred_region
      %34 = dma.done [#allocation3], 128
    $region13: #{tpu_custom_call.1} parent=1 // pred_fallthru
      _
    // Predicated region
    $region14: #{tpu_custom_call.1} parent=1 // pred_check
      _
    $region15: #{tpu_custom_call.1} parent=1 // pred_check_branch
      %36 = sbr.rel (0) target = $region17
    $region16: #{tpu_custom_call.1} parent=1 // pred_region
      %37 = dma.done [#allocation6], 1152
    $region17: #{tpu_custom_call.1} parent=1 // pred_fallthru
      _
    %v38 = vld [vmem:[#allocation5] sm:$0xff]
    %v39 = vld [vmem:[#allocation5 + $0x8] sm:$0xff]
    %v40 = vld [vmem:[#allocation5 + $0x10] sm:$0xff]
    %v41 = vld [vmem:[#allocation5 + $0x18] sm:$0xff]
    %v42 = vld [vmem:[#allocation5 + $0x20] sm:$0xff]
    %v43 = vld [vmem:[#allocation5 + $0x28] sm:$0xff]
    %v44 = vld [vmem:[#allocation5 + $0x30] sm:$0xff]
    %v45 = vld [vmem:[#allocation5 + $0x38] sm:$0xff]
    %v46 = vld [vmem:[#allocation5 + $0x40] sm:$0x1]
    %v47 = vld [vmem:[#allocation2] sm:$0xff]
    %v48 = vlaneseq
    %v49 = vshrl.u32 %v48, 7
    %v50 = vsub.s32 0, %v49
    %v51 = vrot.slane %v46, %v50
    %vm52 = vcmask 261120
    %v54 = vsel %vm52, %v47, 0
    %56 = vmatprep.subr.mxu0 0.0
    %57 = vmatpush1.msra.mxu0 %v38
    %58 = vmatprep.subr.mxu0 0.0
    %59 = vmatpush1.msra.mxu0 %v39
    %60 = vmatprep.subr.mxu0 0.0
    %61 = vmatpush1.msra.mxu0 %v40
    %62 = vmatprep.subr.mxu0 0.0
    %63 = vmatpush1.msra.mxu0 %v41
    %64 = vmatprep.subr.mxu0 0.0
    %65 = vmatpush1.msra.mxu0 0.0
    %66 = vmatprep.subr.mxu0 0.0
    %67 = vmatpush1.msra.mxu0 0.0
    %68 = vmatprep.subr.mxu0 0.0
    %69 = vmatpush1.msra.mxu0 0.0
    %70 = vmatprep.subr.mxu0 0.0
    %71 = vmatpush1.msra.mxu0 0.0
    %72 = vmatprep.subr.mxu0 0.0
    %73 = vmatpush1.msra.mxu0 0.0
    %74 = vmatprep.subr.mxu0 0.0
    %75 = vmatpush1.msra.mxu0 0.0
    %76 = vmatprep.subr.mxu0 0.0
    %77 = vmatpush1.msra.mxu0 0.0
    %78 = vmatprep.subr.mxu0 0.0
    %79 = vmatpush1.msra.mxu0 0.0
    %80 = vmatprep.subr.mxu0 0.0
    %81 = vmatpush1.msra.mxu0 0.0
    %82 = vmatprep.subr.mxu0 0.0
    %83 = vmatpush1.msra.mxu0 0.0
    %84 = vmatprep.subr.mxu0 0.0
    %85 = vmatpush1.msra.mxu0 0.0
    %86 = vmatprep.subr.mxu0 0.0
    %87 = vmatpush1.msra.mxu0 0.0
    %88 = vmatprep.subr.mxu0 0.0
    %89 = vmatpush1.msra.mxu0 0.0
    %90 = vmatprep.subr.mxu0 0.0
    %91 = vmatpush1.msra.mxu0 0.0
    %92 = vmatprep.subr.mxu0 0.0
    %93 = vmatpush1.msra.mxu0 0.0
    %94 = vmatprep.subr.mxu0 0.0
    %95 = vmatpush1.msra.mxu0 0.0
    %96 = vmatprep.subr.mxu0 0.0
    %97 = vmatpush1.msra.mxu0 0.0
    %98 = vmatprep.subr.mxu0 0.0
    %99 = vmatpush1.msra.mxu0 0.0
    %100 = vmatprep.subr.mxu0 0.0
    %101 = vmatpush1.msra.mxu0 0.0
    %102 = vmatprep.subr.mxu0 0.0
    %103 = vmatpush1.msra.mxu0 0.0
    %104 = vmatprep.subr.mxu0 0.0
    %105 = vmatpush1.msra.mxu0 0.0
    %106 = vmatprep.subr.mxu0 0.0
    %107 = vmatpush1.msra.mxu0 0.0
    %108 = vmatprep.subr.mxu0 0.0
    %109 = vmatpush1.msra.mxu0 0.0
    %110 = vmatprep.subr.mxu0 0.0
    %111 = vmatpush1.msra.mxu0 0.0
    %112 = vmatprep.subr.mxu0 0.0
    %113 = vmatpush1.msra.mxu0 0.0
    %114 = vmatprep.subr.mxu0 0.0
    %115 = vmatpush1.msra.mxu0 0.0
    %116 = vmatprep.subr.mxu0 0.0
    %117 = vmatpush1.msra.mxu0 0.0
    %118 = vmatprep.subr.mxu0 0.0
    %119 = vmatpush1.msra.mxu0 0.0
    %120 = vmatprep.mubr.f32.mxu0 0.0
    %121 = vmatmul.mubr.f32.gmra.mrb[0].mxu0 %v54
    %v122 = vpop.f32.mrb[0].mxu0
    %v123 = vadd.f32 %v51, %v122
    %v124 = vpop.f32.mrb[0].mxu0
    %125 = vdwg.mxu0
    %v127 = vsel %vm52, 0.0, 0
    %129 = vmatprep.subr.mxu0 0.0
    %130 = vmatpush1.msra.mxu0 %v42
    %131 = vmatprep.subr.mxu0 0.0
    %132 = vmatpush1.msra.mxu0 %v43
    %133 = vmatprep.subr.mxu0 0.0
    %134 = vmatpush1.msra.mxu0 %v44
    %135 = vmatprep.subr.mxu0 0.0
    %136 = vmatpush1.msra.mxu0 %v45
    %137 = vmatprep.subr.mxu0 0.0
    %138 = vmatpush1.msra.mxu0 0.0
    %139 = vmatprep.subr.mxu0 0.0
    %140 = vmatpush1.msra.mxu0 0.0
    %141 = vmatprep.subr.mxu0 0.0
    %142 = vmatpush1.msra.mxu0 0.0
    %143 = vmatprep.subr.mxu0 0.0
    %144 = vmatpush1.msra.mxu0 0.0
    %145 = vmatprep.subr.mxu0 0.0
    %146 = vmatpush1.msra.mxu0 0.0
    %147 = vmatprep.subr.mxu0 0.0
    %148 = vmatpush1.msra.mxu0 0.0
    %149 = vmatprep.subr.mxu0 0.0
    %150 = vmatpush1.msra.mxu0 0.0
    %151 = vmatprep.subr.mxu0 0.0
    %152 = vmatpush1.msra.mxu0 0.0
    %153 = vmatprep.subr.mxu0 0.0
    %154 = vmatpush1.msra.mxu0 0.0
    %155 = vmatprep.subr.mxu0 0.0
    %156 = vmatpush1.msra.mxu0 0.0
    %157 = vmatprep.subr.mxu0 0.0
    %158 = vmatpush1.msra.mxu0 0.0
    %159 = vmatprep.subr.mxu0 0.0
    %160 = vmatpush1.msra.mxu0 0.0
    %161 = vmatprep.subr.mxu0 0.0
    %162 = vmatpush1.msra.mxu0 0.0
    %163 = vmatprep.subr.mxu0 0.0
    %164 = vmatpush1.msra.mxu0 0.0
    %165 = vmatprep.subr.mxu0 0.0
    %166 = vmatpush1.msra.mxu0 0.0
    %167 = vmatprep.subr.mxu0 0.0
    %168 = vmatpush1.msra.mxu0 0.0
    %169 = vmatprep.subr.mxu0 0.0
    %170 = vmatpush1.msra.mxu0 0.0
    %171 = vmatprep.subr.mxu0 0.0
    %172 = vmatpush1.msra.mxu0 0.0
    %173 = vmatprep.subr.mxu0 0.0
    %174 = vmatpush1.msra.mxu0 0.0
    %175 = vmatprep.subr.mxu0 0.0
    %176 = vmatpush1.msra.mxu0 0.0
    %177 = vmatprep.subr.mxu0 0.0
    %178 = vmatpush1.msra.mxu0 0.0
    %179 = vmatprep.subr.mxu0 0.0
    %180 = vmatpush1.msra.mxu0 0.0
    %181 = vmatprep.subr.mxu0 0.0
    %182 = vmatpush1.msra.mxu0 0.0
    %183 = vmatprep.subr.mxu0 0.0
    %184 = vmatpush1.msra.mxu0 0.0
    %185 = vmatprep.subr.mxu0 0.0
    %186 = vmatpush1.msra.mxu0 0.0
    %187 = vmatprep.subr.mxu0 0.0
    %188 = vmatpush1.msra.mxu0 0.0
    %189 = vmatprep.subr.mxu0 0.0
    %190 = vmatpush1.msra.mxu0 0.0
    %191 = vmatprep.subr.mxu0 0.0
    %192 = vmatpush1.msra.mxu0 0.0
    %193 = vmatprep.mubr.f32.mxu0 0.0
    %194 = vmatmul.mubr.f32.gmra.mrb[0].mxu0 %v127
    %v195 = vpop.f32.mrb[0].mxu0
    %v196 = vadd.f32 0.0, %v195
    %v197 = vpop.f32.mrb[0].mxu0
    %198 = vdwg.mxu0
    %v199 = vadd.f32 %v123, %v196
    %v200 = vxor.u32 %v199, 2147483648
    %v201 = vmul.f32 %v200, 1.442695
    %v202 = vpow.pop %v201
    %v203 = vadd.f32 %v202, 1.0
    %v204 = vrcp.pop %v203
    %v205 = vmul.f32 1.0, %v204
    %v206 = vtanh.pop %v199
    %v207 = vmul.f32 %v205, 0.0
    %209 = vrot.lane.b32.xlu0 %v206, 64
    %v210 = vpop.permute.xlu0 %209
    %v212 = vmul.f32 %v205, %v210
    %214 = vrot.lane.b32.xlu0 %v212, 32
    %v215 = vpop.permute.xlu0 %214
    %v217 = vadd.f32 %v207, %v215
    %v218 = vtanh.pop %v217
    %220 = vrot.lane.b32.xlu0 %v218, 64
    %v221 = vpop.permute.xlu0 %220
    %v223 = vmul.f32 %v205, %v221
    %225 = vrot.lane.b32.xlu0 %v223, 32
    %v226 = vpop.permute.xlu0 %225
    %vm228 = vcmask 253952
    %229 = vst.msk [vmem:[#allocation7] sm:$0x1] %vm228, %v226
    %v230 = vsel %vm52, %v226, 0
    %232 = vmatprep.subr.mxu0 0.0
    %233 = vmatpush1.msra.mxu0 %v42
    %234 = vmatprep.subr.mxu0 0.0
    %235 = vmatpush1.msra.mxu0 %v43
    %236 = vmatprep.subr.mxu0 0.0
    %237 = vmatpush1.msra.mxu0 %v44
    %238 = vmatprep.subr.mxu0 0.0
    %239 = vmatpush1.msra.mxu0 %v45
    %240 = vmatprep.subr.mxu0 0.0
    %241 = vmatpush1.msra.mxu0 0.0
    %242 = vmatprep.subr.mxu0 0.0
    %243 = vmatpush1.msra.mxu0 0.0
    %244 = vmatprep.subr.mxu0 0.0
    %245 = vmatpush1.msra.mxu0 0.0
    %246 = vmatprep.subr.mxu0 0.0
    %247 = vmatpush1.msra.mxu0 0.0
    %248 = vmatprep.subr.mxu0 0.0
    %249 = vmatpush1.msra.mxu0 0.0
    %250 = vmatprep.subr.mxu0 0.0
    %251 = vmatpush1.msra.mxu0 0.0
    %252 = vmatprep.subr.mxu0 0.0
    %253 = vmatpush1.msra.mxu0 0.0
    %254 = vmatprep.subr.mxu0 0.0
    %255 = vmatpush1.msra.mxu0 0.0
    %256 = vmatprep.subr.mxu0 0.0
    %257 = vmatpush1.msra.mxu0 0.0
    %258 = vmatprep.subr.mxu0 0.0
    %259 = vmatpush1.msra.mxu0 0.0
    %260 = vmatprep.subr.mxu0 0.0
    %261 = vmatpush1.msra.mxu0 0.0
    %262 = vmatprep.subr.mxu0 0.0
    %263 = vmatpush1.msra.mxu0 0.0
    %264 = vmatprep.subr.mxu0 0.0
    %265 = vmatpush1.msra.mxu0 0.0
    %266 = vmatprep.subr.mxu0 0.0
    %267 = vmatpush1.msra.mxu0 0.0
    %268 = vmatprep.subr.mxu0 0.0
    %269 = vmatpush1.msra.mxu0 0.0
    %270 = vmatprep.subr.mxu0 0.0
    %271 = vmatpush1.msra.mxu0 0.0
    %272 = vmatprep.subr.mxu0 0.0
    %273 = vmatpush1.msra.mxu0 0.0
    %274 = vmatprep.subr.mxu0 0.0
    %275 = vmatpush1.msra.mxu0 0.0
    %276 = vmatprep.subr.mxu0 0.0
    %277 = vmatpush1.msra.mxu0 0.0
    %278 = vmatprep.subr.mxu0 0.0
    %279 = vmatpush1.msra.mxu0 0.0
    %280 = vmatprep.subr.mxu0 0.0
    %281 = vmatpush1.msra.mxu0 0.0
    %282 = vmatprep.subr.mxu0 0.0
    %283 = vmatpush1.msra.mxu0 0.0
    %284 = vmatprep.subr.mxu0 0.0
    %285 = vmatpush1.msra.mxu0 0.0
    %286 = vmatprep.subr.mxu0 0.0
    %287 = vmatpush1.msra.mxu0 0.0
    %288 = vmatprep.subr.mxu0 0.0
    %289 = vmatpush1.msra.mxu0 0.0
    %290 = vmatprep.subr.mxu0 0.0
    %291 = vmatpush1.msra.mxu0 0.0
    %292 = vmatprep.subr.mxu0 0.0
    %293 = vmatpush1.msra.mxu0 0.0
    %294 = vmatprep.subr.mxu0 0.0
    %295 = vmatpush1.msra.mxu0 0.0
    %296 = vmatprep.mubr.f32.mxu0 0.0
    %297 = vmatmul.mubr.f32.gmra.mrb[0].mxu0 %v230
    %v298 = vpop.f32.mrb[0].mxu0
    %v299 = vadd.f32 0.0, %v298
    %v300 = vpop.f32.mrb[0].mxu0
    %301 = vdwg.mxu0
    %v303 = vrot.slane %v299, 7
    %v305 = vadd.f32 %v123, %v303
    %v306 = vxor.u32 %v305, 2147483648
    %v307 = vmul.f32 %v306, 1.442695
    %v308 = vpow.pop %v307
    %v309 = vadd.f32 %v308, 1.0
    %v310 = vrcp.pop %v309
    %v311 = vmul.f32 1.0, %v310
    %v312 = vtanh.pop %v305
    %v314 = vrot.slane %v217, 7
    %v316 = vmul.f32 %v311, %v314
    %318 = vrot.lane.b32.xlu0 %v312, 64
    %v319 = vpop.permute.xlu0 %318
    %v321 = vmul.f32 %v311, %v319
    %323 = vrot.lane.b32.xlu0 %v321, 32
    %v324 = vpop.permute.xlu0 %323
    %v326 = vadd.f32 %v316, %v324
    %v327 = vtanh.pop %v326
    %329 = vrot.lane.b32.xlu0 %v327, 64
    %v330 = vpop.permute.xlu0 %329
    %v332 = vmul.f32 %v311, %v330
    %334 = vrot.lane.b32.xlu0 %v332, 32
    %v335 = vpop.permute.xlu0 %334
    %vm337 = vcmask 254977
    %338 = vst.msk [vmem:[#allocation7] sm:$0x2] %vm337, %v335
    %v339 = vrot.slane %v332, 1
    %340 = vrot.lane.b32.xlu0 %v339, 32
    %v341 = vpop.permute.xlu0 %340
    %v342 = vsel %vm52, %v341, 0
    %344 = vmatprep.subr.mxu0 0.0
    %345 = vmatpush1.msra.mxu0 %v42
    %346 = vmatprep.subr.mxu0 0.0
    %347 = vmatpush1.msra.mxu0 %v43
    %348 = vmatprep.subr.mxu0 0.0
    %349 = vmatpush1.msra.mxu0 %v44
    %350 = vmatprep.subr.mxu0 0.0
    %351 = vmatpush1.msra.mxu0 %v45
    %352 = vmatprep.subr.mxu0 0.0
    %353 = vmatpush1.msra.mxu0 0.0
    %354 = vmatprep.subr.mxu0 0.0
    %355 = vmatpush1.msra.mxu0 0.0
    %356 = vmatprep.subr.mxu0 0.0
    %357 = vmatpush1.msra.mxu0 0.0
    %358 = vmatprep.subr.mxu0 0.0
    %359 = vmatpush1.msra.mxu0 0.0
    %360 = vmatprep.subr.mxu0 0.0
    %361 = vmatpush1.msra.mxu0 0.0
    %362 = vmatprep.subr.mxu0 0.0
    %363 = vmatpush1.msra.mxu0 0.0
    %364 = vmatprep.subr.mxu0 0.0
    %365 = vmatpush1.msra.mxu0 0.0
    %366 = vmatprep.subr.mxu0 0.0
    %367 = vmatpush1.msra.mxu0 0.0
    %368 = vmatprep.subr.mxu0 0.0
    %369 = vmatpush1.msra.mxu0 0.0
    %370 = vmatprep.subr.mxu0 0.0
    %371 = vmatpush1.msra.mxu0 0.0
    %372 = vmatprep.subr.mxu0 0.0
    %373 = vmatpush1.msra.mxu0 0.0
    %374 = vmatprep.subr.mxu0 0.0
    %375 = vmatpush1.msra.mxu0 0.0
    %376 = vmatprep.subr.mxu0 0.0
    %377 = vmatpush1.msra.mxu0 0.0
    %378 = vmatprep.subr.mxu0 0.0
    %379 = vmatpush1.msra.mxu0 0.0
    %380 = vmatprep.subr.mxu0 0.0
    %381 = vmatpush1.msra.mxu0 0.0
    %382 = vmatprep.subr.mxu0 0.0
    %383 = vmatpush1.msra.mxu0 0.0
    %384 = vmatprep.subr.mxu0 0.0
    %385 = vmatpush1.msra.mxu0 0.0
    %386 = vmatprep.subr.mxu0 0.0
    %387 = vmatpush1.msra.mxu0 0.0
    %388 = vmatprep.subr.mxu0 0.0
    %389 = vmatpush1.msra.mxu0 0.0
    %390 = vmatprep.subr.mxu0 0.0
    %391 = vmatpush1.msra.mxu0 0.0
    %392 = vmatprep.subr.mxu0 0.0
    %393 = vmatpush1.msra.mxu0 0.0
    %394 = vmatprep.subr.mxu0 0.0
    %395 = vmatpush1.msra.mxu0 0.0
    %396 = vmatprep.subr.mxu0 0.0
    %397 = vmatpush1.msra.mxu0 0.0
    %398 = vmatprep.subr.mxu0 0.0
    %399 = vmatpush1.msra.mxu0 0.0
    %400 = vmatprep.subr.mxu0 0.0
    %401 = vmatpush1.msra.mxu0 0.0
    %402 = vmatprep.subr.mxu0 0.0
    %403 = vmatpush1.msra.mxu0 0.0
    %404 = vmatprep.subr.mxu0 0.0
    %405 = vmatpush1.msra.mxu0 0.0
    %406 = vmatprep.subr.mxu0 0.0
    %407 = vmatpush1.msra.mxu0 0.0
    %408 = vmatprep.mubr.f32.mxu0 0.0
    %409 = vmatmul.mubr.f32.gmra.mrb[0].mxu0 %v342
    %v410 = vpop.f32.mrb[0].mxu0
    %v411 = vadd.f32 0.0, %v410
    %v412 = vpop.f32.mrb[0].mxu0
    %413 = vdwg.mxu0
    %v415 = vrot.slane %v411, 6
    %v417 = vadd.f32 %v123, %v415
    %v418 = vxor.u32 %v417, 2147483648
    %v419 = vmul.f32 %v418, 1.442695
    %v420 = vpow.pop %v419
    %v421 = vadd.f32 %v420, 1.0
    %v422 = vrcp.pop %v421
    %v423 = vmul.f32 1.0, %v422
    %v424 = vtanh.pop %v417
    %v426 = vrot.slane %v326, 7
    %v428 = vmul.f32 %v423, %v426
    %430 = vrot.lane.b32.xlu0 %v424, 64
    %v431 = vpop.permute.xlu0 %430
    %v433 = vmul.f32 %v423, %v431
    %435 = vrot.lane.b32.xlu0 %v433, 32
    %v436 = vpop.permute.xlu0 %435
    %v438 = vadd.f32 %v428, %v436
    %v439 = vtanh.pop %v438
    %441 = vrot.lane.b32.xlu0 %v439, 64
    %v442 = vpop.permute.xlu0 %441
    %v444 = vmul.f32 %v423, %v442
    %446 = vrot.lane.b32.xlu0 %v444, 32
    %v447 = vpop.permute.xlu0 %446
    %vm449 = vcmask 256002
    %450 = vst.msk [vmem:[#allocation7] sm:$0x4] %vm449, %v447
    %v451 = vrot.slane %v444, 2
    %452 = vrot.lane.b32.xlu0 %v451, 32
    %v453 = vpop.permute.xlu0 %452
    %v454 = vsel %vm52, %v453, 0
    %456 = vmatprep.subr.mxu0 0.0
    %457 = vmatpush1.msra.mxu0 %v42
    %458 = vmatprep.subr.mxu0 0.0
    %459 = vmatpush1.msra.mxu0 %v43
    %460 = vmatprep.subr.mxu0 0.0
    %461 = vmatpush1.msra.mxu0 %v44
    %462 = vmatprep.subr.mxu0 0.0
    %463 = vmatpush1.msra.mxu0 %v45
    %464 = vmatprep.subr.mxu0 0.0
    %465 = vmatpush1.msra.mxu0 0.0
    %466 = vmatprep.subr.mxu0 0.0
    %467 = vmatpush1.msra.mxu0 0.0
    %468 = vmatprep.subr.mxu0 0.0
    %469 = vmatpush1.msra.mxu0 0.0
    %470 = vmatprep.subr.mxu0 0.0
    %471 = vmatpush1.msra.mxu0 0.0
    %472 = vmatprep.subr.mxu0 0.0
    %473 = vmatpush1.msra.mxu0 0.0
    %474 = vmatprep.subr.mxu0 0.0
    %475 = vmatpush1.msra.mxu0 0.0
    %476 = vmatprep.subr.mxu0 0.0
    %477 = vmatpush1.msra.mxu0 0.0
    %478 = vmatprep.subr.mxu0 0.0
    %479 = vmatpush1.msra.mxu0 0.0
    %480 = vmatprep.subr.mxu0 0.0
    %481 = vmatpush1.msra.mxu0 0.0
    %482 = vmatprep.subr.mxu0 0.0
    %483 = vmatpush1.msra.mxu0 0.0
    %484 = vmatprep.subr.mxu0 0.0
    %485 = vmatpush1.msra.mxu0 0.0
    %486 = vmatprep.subr.mxu0 0.0
    %487 = vmatpush1.msra.mxu0 0.0
    %488 = vmatprep.subr.mxu0 0.0
    %489 = vmatpush1.msra.mxu0 0.0
    %490 = vmatprep.subr.mxu0 0.0
    %491 = vmatpush1.msra.mxu0 0.0
    %492 = vmatprep.subr.mxu0 0.0
    %493 = vmatpush1.msra.mxu0 0.0
    %494 = vmatprep.subr.mxu0 0.0
    %495 = vmatpush1.msra.mxu0 0.0
    %496 = vmatprep.subr.mxu0 0.0
    %497 = vmatpush1.msra.mxu0 0.0
    %498 = vmatprep.subr.mxu0 0.0
    %499 = vmatpush1.msra.mxu0 0.0
    %500 = vmatprep.subr.mxu0 0.0
    %501 = vmatpush1.msra.mxu0 0.0
    %502 = vmatprep.subr.mxu0 0.0
    %503 = vmatpush1.msra.mxu0 0.0
    %504 = vmatprep.subr.mxu0 0.0
    %505 = vmatpush1.msra.mxu0 0.0
    %506 = vmatprep.subr.mxu0 0.0
    %507 = vmatpush1.msra.mxu0 0.0
    %508 = vmatprep.subr.mxu0 0.0
    %509 = vmatpush1.msra.mxu0 0.0
    %510 = vmatprep.subr.mxu0 0.0
    %511 = vmatpush1.msra.mxu0 0.0
    %512 = vmatprep.subr.mxu0 0.0
    %513 = vmatpush1.msra.mxu0 0.0
    %514 = vmatprep.subr.mxu0 0.0
    %515 = vmatpush1.msra.mxu0 0.0
    %516 = vmatprep.subr.mxu0 0.0
    %517 = vmatpush1.msra.mxu0 0.0
    %518 = vmatprep.subr.mxu0 0.0
    %519 = vmatpush1.msra.mxu0 0.0
    %520 = vmatprep.mubr.f32.mxu0 0.0
    %521 = vmatmul.mubr.f32.gmra.mrb[0].mxu0 %v454
    %v522 = vpop.f32.mrb[0].mxu0
    %v523 = vadd.f32 0.0, %v522
    %v524 = vpop.f32.mrb[0].mxu0
    %525 = vdwg.mxu0
    %v527 = vrot.slane %v523, 5
    %v529 = vadd.f32 %v123, %v527
    %v530 = vxor.u32 %v529, 2147483648
    %v531 = vmul.f32 %v530, 1.442695
    %v532 = vpow.pop %v531
    %v533 = vadd.f32 %v532, 1.0
    %v534 = vrcp.pop %v533
    %v535 = vmul.f32 1.0, %v534
    %v536 = vtanh.pop %v529
    %v538 = vrot.slane %v438, 7
    %v540 = vmul.f32 %v535, %v538
    %542 = vrot.lane.b32.xlu0 %v536, 64
    %v543 = vpop.permute.xlu0 %542
    %v545 = vmul.f32 %v535, %v543
    %547 = vrot.lane.b32.xlu0 %v545, 32
    %v548 = vpop.permute.xlu0 %547
    %v550 = vadd.f32 %v540, %v548
    %v551 = vtanh.pop %v550
    %553 = vrot.lane.b32.xlu0 %v551, 64
    %v554 = vpop.permute.xlu0 %553
    %v556 = vmul.f32 %v535, %v554
    %558 = vrot.lane.b32.xlu0 %v556, 32
    %v559 = vpop.permute.xlu0 %558
    %vm561 = vcmask 257027
    %562 = vst.msk [vmem:[#allocation7] sm:$0x8] %vm561, %v559
    %v563 = vrot.slane %v556, 3
    %564 = vrot.lane.b32.xlu0 %v563, 32
    %v565 = vpop.permute.xlu0 %564
    %v566 = vsel %vm52, %v565, 0
    %568 = vmatprep.subr.mxu0 0.0
    %569 = vmatpush1.msra.mxu0 %v42
    %570 = vmatprep.subr.mxu0 0.0
    %571 = vmatpush1.msra.mxu0 %v43
    %572 = vmatprep.subr.mxu0 0.0
    %573 = vmatpush1.msra.mxu0 %v44
    %574 = vmatprep.subr.mxu0 0.0
    %575 = vmatpush1.msra.mxu0 %v45
    %576 = vmatprep.subr.mxu0 0.0
    %577 = vmatpush1.msra.mxu0 0.0
    %578 = vmatprep.subr.mxu0 0.0
    %579 = vmatpush1.msra.mxu0 0.0
    %580 = vmatprep.subr.mxu0 0.0
    %581 = vmatpush1.msra.mxu0 0.0
    %582 = vmatprep.subr.mxu0 0.0
    %583 = vmatpush1.msra.mxu0 0.0
    %584 = vmatprep.subr.mxu0 0.0
    %585 = vmatpush1.msra.mxu0 0.0
    %586 = vmatprep.subr.mxu0 0.0
    %587 = vmatpush1.msra.mxu0 0.0
    %588 = vmatprep.subr.mxu0 0.0
    %589 = vmatpush1.msra.mxu0 0.0
    %590 = vmatprep.subr.mxu0 0.0
    %591 = vmatpush1.msra.mxu0 0.0
    %592 = vmatprep.subr.mxu0 0.0
    %593 = vmatpush1.msra.mxu0 0.0
    %594 = vmatprep.subr.mxu0 0.0
    %595 = vmatpush1.msra.mxu0 0.0
    %596 = vmatprep.subr.mxu0 0.0
    %597 = vmatpush1.msra.mxu0 0.0
    %598 = vmatprep.subr.mxu0 0.0
    %599 = vmatpush1.msra.mxu0 0.0
    %600 = vmatprep.subr.mxu0 0.0
    %601 = vmatpush1.msra.mxu0 0.0
    %602 = vmatprep.subr.mxu0 0.0
    %603 = vmatpush1.msra.mxu0 0.0
    %604 = vmatprep.subr.mxu0 0.0
    %605 = vmatpush1.msra.mxu0 0.0
    %606 = vmatprep.subr.mxu0 0.0
    %607 = vmatpush1.msra.mxu0 0.0
    %608 = vmatprep.subr.mxu0 0.0
    %609 = vmatpush1.msra.mxu0 0.0
    %610 = vmatprep.subr.mxu0 0.0
    %611 = vmatpush1.msra.mxu0 0.0
    %612 = vmatprep.subr.mxu0 0.0
    %613 = vmatpush1.msra.mxu0 0.0
    %614 = vmatprep.subr.mxu0 0.0
    %615 = vmatpush1.msra.mxu0 0.0
    %616 = vmatprep.subr.mxu0 0.0
    %617 = vmatpush1.msra.mxu0 0.0
    %618 = vmatprep.subr.mxu0 0.0
    %619 = vmatpush1.msra.mxu0 0.0
    %620 = vmatprep.subr.mxu0 0.0
    %621 = vmatpush1.msra.mxu0 0.0
    %622 = vmatprep.subr.mxu0 0.0
    %623 = vmatpush1.msra.mxu0 0.0
    %624 = vmatprep.subr.mxu0 0.0
    %625 = vmatpush1.msra.mxu0 0.0
    %626 = vmatprep.subr.mxu0 0.0
    %627 = vmatpush1.msra.mxu0 0.0
    %628 = vmatprep.subr.mxu0 0.0
    %629 = vmatpush1.msra.mxu0 0.0
    %630 = vmatprep.subr.mxu0 0.0
    %631 = vmatpush1.msra.mxu0 0.0
    %632 = vmatprep.mubr.f32.mxu0 0.0
    %633 = vmatmul.mubr.f32.gmra.mrb[0].mxu0 %v566
    %v634 = vpop.f32.mrb[0].mxu0
    %v635 = vadd.f32 0.0, %v634
    %v636 = vpop.f32.mrb[0].mxu0
    %637 = vdwg.mxu0
    %v639 = vrot.slane %v635, 4
    %v641 = vadd.f32 %v123, %v639
    %v642 = vxor.u32 %v641, 2147483648
    %v643 = vmul.f32 %v642, 1.442695
    %v644 = vpow.pop %v643
    %v645 = vadd.f32 %v644, 1.0
    %v646 = vrcp.pop %v645
    %v647 = vmul.f32 1.0, %v646
    %v648 = vtanh.pop %v641
    %v650 = vrot.slane %v550, 7
    %v652 = vmul.f32 %v647, %v650
    %654 = vrot.lane.b32.xlu0 %v648, 64
    %v655 = vpop.permute.xlu0 %654
    %v657 = vmul.f32 %v647, %v655
    %659 = vrot.lane.b32.xlu0 %v657, 32
    %v660 = vpop.permute.xlu0 %659
    %v662 = vadd.f32 %v652, %v660
    %v663 = vtanh.pop %v662
    %665 = vrot.lane.b32.xlu0 %v663, 64
    %v666 = vpop.permute.xlu0 %665
    %v668 = vmul.f32 %v647, %v666
    %670 = vrot.lane.b32.xlu0 %v668, 32
    %v671 = vpop.permute.xlu0 %670
    %vm673 = vcmask 258052
    %674 = vst.msk [vmem:[#allocation7] sm:$0x10] %vm673, %v671
    %v675 = vrot.slane %v668, 4
    %676 = vrot.lane.b32.xlu0 %v675, 32
    %v677 = vpop.permute.xlu0 %676
    %v678 = vsel %vm52, %v677, 0
    %680 = vmatprep.subr.mxu0 0.0
    %681 = vmatpush1.msra.mxu0 %v42
    %682 = vmatprep.subr.mxu0 0.0
    %683 = vmatpush1.msra.mxu0 %v43
    %684 = vmatprep.subr.mxu0 0.0
    %685 = vmatpush1.msra.mxu0 %v44
    %686 = vmatprep.subr.mxu0 0.0
    %687 = vmatpush1.msra.mxu0 %v45
    %688 = vmatprep.subr.mxu0 0.0
    %689 = vmatpush1.msra.mxu0 0.0
    %690 = vmatprep.subr.mxu0 0.0
    %691 = vmatpush1.msra.mxu0 0.0
    %692 = vmatprep.subr.mxu0 0.0
    %693 = vmatpush1.msra.mxu0 0.0
    %694 = vmatprep.subr.mxu0 0.0
    %695 = vmatpush1.msra.mxu0 0.0
    %696 = vmatprep.subr.mxu0 0.0
    %697 = vmatpush1.msra.mxu0 0.0
    %698 = vmatprep.subr.mxu0 0.0
    %699 = vmatpush1.msra.mxu0 0.0
    %700 = vmatprep.subr.mxu0 0.0
    %701 = vmatpush1.msra.mxu0 0.0
    %702 = vmatprep.subr.mxu0 0.0
    %703 = vmatpush1.msra.mxu0 0.0
    %704 = vmatprep.subr.mxu0 0.0
    %705 = vmatpush1.msra.mxu0 0.0
    %706 = vmatprep.subr.mxu0 0.0
    %707 = vmatpush1.msra.mxu0 0.0
    %708 = vmatprep.subr.mxu0 0.0
    %709 = vmatpush1.msra.mxu0 0.0
    %710 = vmatprep.subr.mxu0 0.0
    %711 = vmatpush1.msra.mxu0 0.0
    %712 = vmatprep.subr.mxu0 0.0
    %713 = vmatpush1.msra.mxu0 0.0
    %714 = vmatprep.subr.mxu0 0.0
    %715 = vmatpush1.msra.mxu0 0.0
    %716 = vmatprep.subr.mxu0 0.0
    %717 = vmatpush1.msra.mxu0 0.0
    %718 = vmatprep.subr.mxu0 0.0
    %719 = vmatpush1.msra.mxu0 0.0
    %720 = vmatprep.subr.mxu0 0.0
    %721 = vmatpush1.msra.mxu0 0.0
    %722 = vmatprep.subr.mxu0 0.0
    %723 = vmatpush1.msra.mxu0 0.0
    %724 = vmatprep.subr.mxu0 0.0
    %725 = vmatpush1.msra.mxu0 0.0
    %726 = vmatprep.subr.mxu0 0.0
    %727 = vmatpush1.msra.mxu0 0.0
    %728 = vmatprep.subr.mxu0 0.0
    %729 = vmatpush1.msra.mxu0 0.0
    %730 = vmatprep.subr.mxu0 0.0
    %731 = vmatpush1.msra.mxu0 0.0
    %732 = vmatprep.subr.mxu0 0.0
    %733 = vmatpush1.msra.mxu0 0.0
    %734 = vmatprep.subr.mxu0 0.0
    %735 = vmatpush1.msra.mxu0 0.0
    %736 = vmatprep.subr.mxu0 0.0
    %737 = vmatpush1.msra.mxu0 0.0
    %738 = vmatprep.subr.mxu0 0.0
    %739 = vmatpush1.msra.mxu0 0.0
    %740 = vmatprep.subr.mxu0 0.0
    %741 = vmatpush1.msra.mxu0 0.0
    %742 = vmatprep.subr.mxu0 0.0
    %743 = vmatpush1.msra.mxu0 0.0
    %744 = vmatprep.mubr.f32.mxu0 0.0
    %745 = vmatmul.mubr.f32.gmra.mrb[0].mxu0 %v678
    %v746 = vpop.f32.mrb[0].mxu0
    %v747 = vadd.f32 0.0, %v746
    %v748 = vpop.f32.mrb[0].mxu0
    %749 = vdwg.mxu0
    %v751 = vrot.slane %v747, 3
    %v753 = vadd.f32 %v123, %v751
    %v754 = vxor.u32 %v753, 2147483648
    %v755 = vmul.f32 %v754, 1.442695
    %v756 = vpow.pop %v755
    %v757 = vadd.f32 %v756, 1.0
    %v758 = vrcp.pop %v757
    %v759 = vmul.f32 1.0, %v758
    %v760 = vtanh.pop %v753
    %v762 = vrot.slane %v662, 7
    %v764 = vmul.f32 %v759, %v762
    %766 = vrot.lane.b32.xlu0 %v760, 64
    %v767 = vpop.permute.xlu0 %766
    %v769 = vmul.f32 %v759, %v767
    %771 = vrot.lane.b32.xlu0 %v769, 32
    %v772 = vpop.permute.xlu0 %771
    %v774 = vadd.f32 %v764, %v772
    %v775 = vtanh.pop %v774
    %777 = vrot.lane.b32.xlu0 %v775, 64
    %v778 = vpop.permute.xlu0 %777
    %v780 = vmul.f32 %v759, %v778
    %782 = vrot.lane.b32.xlu0 %v780, 32
    %v783 = vpop.permute.xlu0 %782
    %vm785 = vcmask 259077
    %786 = vst.msk [vmem:[#allocation7] sm:$0x20] %vm785, %v783
    %v787 = vrot.slane %v780, 5
    %788 = vrot.lane.b32.xlu0 %v787, 32
    %v789 = vpop.permute.xlu0 %788
    %v790 = vsel %vm52, %v789, 0
    %792 = vmatprep.subr.mxu0 0.0
    %793 = vmatpush1.msra.mxu0 %v42
    %794 = vmatprep.subr.mxu0 0.0
    %795 = vmatpush1.msra.mxu0 %v43
    %796 = vmatprep.subr.mxu0 0.0
    %797 = vmatpush1.msra.mxu0 %v44
    %798 = vmatprep.subr.mxu0 0.0
    %799 = vmatpush1.msra.mxu0 %v45
    %800 = vmatprep.subr.mxu0 0.0
    %801 = vmatpush1.msra.mxu0 0.0
    %802 = vmatprep.subr.mxu0 0.0
    %803 = vmatpush1.msra.mxu0 0.0
    %804 = vmatprep.subr.mxu0 0.0
    %805 = vmatpush1.msra.mxu0 0.0
    %806 = vmatprep.subr.mxu0 0.0
    %807 = vmatpush1.msra.mxu0 0.0
    %808 = vmatprep.subr.mxu0 0.0
    %809 = vmatpush1.msra.mxu0 0.0
    %810 = vmatprep.subr.mxu0 0.0
    %811 = vmatpush1.msra.mxu0 0.0
    %812 = vmatprep.subr.mxu0 0.0
    %813 = vmatpush1.msra.mxu0 0.0
    %814 = vmatprep.subr.mxu0 0.0
    %815 = vmatpush1.msra.mxu0 0.0
    %816 = vmatprep.subr.mxu0 0.0
    %817 = vmatpush1.msra.mxu0 0.0
    %818 = vmatprep.subr.mxu0 0.0
    %819 = vmatpush1.msra.mxu0 0.0
    %820 = vmatprep.subr.mxu0 0.0
    %821 = vmatpush1.msra.mxu0 0.0
    %822 = vmatprep.subr.mxu0 0.0
    %823 = vmatpush1.msra.mxu0 0.0
    %824 = vmatprep.subr.mxu0 0.0
    %825 = vmatpush1.msra.mxu0 0.0
    %826 = vmatprep.subr.mxu0 0.0
    %827 = vmatpush1.msra.mxu0 0.0
    %828 = vmatprep.subr.mxu0 0.0
    %829 = vmatpush1.msra.mxu0 0.0
    %830 = vmatprep.subr.mxu0 0.0
    %831 = vmatpush1.msra.mxu0 0.0
    %832 = vmatprep.subr.mxu0 0.0
    %833 = vmatpush1.msra.mxu0 0.0
    %834 = vmatprep.subr.mxu0 0.0
    %835 = vmatpush1.msra.mxu0 0.0
    %836 = vmatprep.subr.mxu0 0.0
    %837 = vmatpush1.msra.mxu0 0.0
    %838 = vmatprep.subr.mxu0 0.0
    %839 = vmatpush1.msra.mxu0 0.0
    %840 = vmatprep.subr.mxu0 0.0
    %841 = vmatpush1.msra.mxu0 0.0
    %842 = vmatprep.subr.mxu0 0.0
    %843 = vmatpush1.msra.mxu0 0.0
    %844 = vmatprep.subr.mxu0 0.0
    %845 = vmatpush1.msra.mxu0 0.0
    %846 = vmatprep.subr.mxu0 0.0
    %847 = vmatpush1.msra.mxu0 0.0
    %848 = vmatprep.subr.mxu0 0.0
    %849 = vmatpush1.msra.mxu0 0.0
    %850 = vmatprep.subr.mxu0 0.0
    %851 = vmatpush1.msra.mxu0 0.0
    %852 = vmatprep.subr.mxu0 0.0
    %853 = vmatpush1.msra.mxu0 0.0
    %854 = vmatprep.subr.mxu0 0.0
    %855 = vmatpush1.msra.mxu0 0.0
    %856 = vmatprep.mubr.f32.mxu0 0.0
    %857 = vmatmul.mubr.f32.gmra.mrb[0].mxu0 %v790
    %v858 = vpop.f32.mrb[0].mxu0
    %v859 = vadd.f32 0.0, %v858
    %v860 = vpop.f32.mrb[0].mxu0
    %861 = vdwg.mxu0
    %v863 = vrot.slane %v859, 2
    %v865 = vadd.f32 %v123, %v863
    %v866 = vxor.u32 %v865, 2147483648
    %v867 = vmul.f32 %v866, 1.442695
    %v868 = vpow.pop %v867
    %v869 = vadd.f32 %v868, 1.0
    %v870 = vrcp.pop %v869
    %v871 = vmul.f32 1.0, %v870
    %v872 = vtanh.pop %v865
    %v874 = vrot.slane %v774, 7
    %v876 = vmul.f32 %v871, %v874
    %878 = vrot.lane.b32.xlu0 %v872, 64
    %v879 = vpop.permute.xlu0 %878
    %v881 = vmul.f32 %v871, %v879
    %883 = vrot.lane.b32.xlu0 %v881, 32
    %v884 = vpop.permute.xlu0 %883
    %v886 = vadd.f32 %v876, %v884
    %v887 = vtanh.pop %v886
    %889 = vrot.lane.b32.xlu0 %v887, 64
    %v890 = vpop.permute.xlu0 %889
    %v892 = vmul.f32 %v871, %v890
    %894 = vrot.lane.b32.xlu0 %v892, 32
    %v895 = vpop.permute.xlu0 %894
    %vm897 = vcmask 260102
    %898 = vst.msk [vmem:[#allocation7] sm:$0x40] %vm897, %v895
    %v899 = vrot.slane %v892, 6
    %900 = vrot.lane.b32.xlu0 %v899, 32
    %v901 = vpop.permute.xlu0 %900
    %v902 = vsel %vm52, %v901, 0
    %904 = vmatprep.subr.mxu0 0.0
    %905 = vmatpush1.msra.mxu0 %v42
    %906 = vmatprep.subr.mxu0 0.0
    %907 = vmatpush1.msra.mxu0 %v43
    %908 = vmatprep.subr.mxu0 0.0
    %909 = vmatpush1.msra.mxu0 %v44
    %910 = vmatprep.subr.mxu0 0.0
    %911 = vmatpush1.msra.mxu0 %v45
    %912 = vmatprep.subr.mxu0 0.0
    %913 = vmatpush1.msra.mxu0 0.0
    %914 = vmatprep.subr.mxu0 0.0
    %915 = vmatpush1.msra.mxu0 0.0
    %916 = vmatprep.subr.mxu0 0.0
    %917 = vmatpush1.msra.mxu0 0.0
    %918 = vmatprep.subr.mxu0 0.0
    %919 = vmatpush1.msra.mxu0 0.0
    %920 = vmatprep.subr.mxu0 0.0
    %921 = vmatpush1.msra.mxu0 0.0
    %922 = vmatprep.subr.mxu0 0.0
    %923 = vmatpush1.msra.mxu0 0.0
    %924 = vmatprep.subr.mxu0 0.0
    %925 = vmatpush1.msra.mxu0 0.0
    %926 = vmatprep.subr.mxu0 0.0
    %927 = vmatpush1.msra.mxu0 0.0
    %928 = vmatprep.subr.mxu0 0.0
    %929 = vmatpush1.msra.mxu0 0.0
    %930 = vmatprep.subr.mxu0 0.0
    %931 = vmatpush1.msra.mxu0 0.0
    %932 = vmatprep.subr.mxu0 0.0
    %933 = vmatpush1.msra.mxu0 0.0
    %934 = vmatprep.subr.mxu0 0.0
    %935 = vmatpush1.msra.mxu0 0.0
    %936 = vmatprep.subr.mxu0 0.0
    %937 = vmatpush1.msra.mxu0 0.0
    %938 = vmatprep.subr.mxu0 0.0
    %939 = vmatpush1.msra.mxu0 0.0
    %940 = vmatprep.subr.mxu0 0.0
    %941 = vmatpush1.msra.mxu0 0.0
    %942 = vmatprep.subr.mxu0 0.0
    %943 = vmatpush1.msra.mxu0 0.0
    %944 = vmatprep.subr.mxu0 0.0
    %945 = vmatpush1.msra.mxu0 0.0
    %946 = vmatprep.subr.mxu0 0.0
    %947 = vmatpush1.msra.mxu0 0.0
    %948 = vmatprep.subr.mxu0 0.0
    %949 = vmatpush1.msra.mxu0 0.0
    %950 = vmatprep.subr.mxu0 0.0
    %951 = vmatpush1.msra.mxu0 0.0
    %952 = vmatprep.subr.mxu0 0.0
    %953 = vmatpush1.msra.mxu0 0.0
    %954 = vmatprep.subr.mxu0 0.0
    %955 = vmatpush1.msra.mxu0 0.0
    %956 = vmatprep.subr.mxu0 0.0
    %957 = vmatpush1.msra.mxu0 0.0
    %958 = vmatprep.subr.mxu0 0.0
    %959 = vmatpush1.msra.mxu0 0.0
    %960 = vmatprep.subr.mxu0 0.0
    %961 = vmatpush1.msra.mxu0 0.0
    %962 = vmatprep.subr.mxu0 0.0
    %963 = vmatpush1.msra.mxu0 0.0
    %964 = vmatprep.subr.mxu0 0.0
    %965 = vmatpush1.msra.mxu0 0.0
    %966 = vmatprep.subr.mxu0 0.0
    %967 = vmatpush1.msra.mxu0 0.0
    %968 = vmatprep.mubr.f32.mxu0 0.0
    %969 = vmatmul.mubr.f32.gmra.mrb[0].mxu0 %v902
    %v970 = vpop.f32.mrb[0].mxu0
    %v971 = vadd.f32 0.0, %v970
    %v972 = vpop.f32.mrb[0].mxu0
    %973 = vdwg.mxu0
    %v975 = vrot.slane %v971, 1
    %v977 = vadd.f32 %v123, %v975
    %v978 = vxor.u32 %v977, 2147483648
    %v979 = vmul.f32 %v978, 1.442695
    %v980 = vpow.pop %v979
    %v981 = vadd.f32 %v980, 1.0
    %v982 = vrcp.pop %v981
    %v983 = vmul.f32 1.0, %v982
    %v984 = vtanh.pop %v977
    %v986 = vrot.slane %v886, 7
    %v988 = vmul.f32 %v983, %v986
    %990 = vrot.lane.b32.xlu0 %v984, 64
    %v991 = vpop.permute.xlu0 %990
    %v993 = vmul.f32 %v983, %v991
    %995 = vrot.lane.b32.xlu0 %v993, 32
    %v996 = vpop.permute.xlu0 %995
    %v998 = vadd.f32 %v988, %v996
    %v999 = vtanh.pop %v998
    %1001 = vrot.lane.b32.xlu0 %v999, 64
    %v1002 = vpop.permute.xlu0 %1001
    %v1004 = vmul.f32 %v983, %v1002
    %1006 = vrot.lane.b32.xlu0 %v1004, 32
    %v1007 = vpop.permute.xlu0 %1006
    %vm1009 = vcmask 261127
    %1010 = vst.msk [vmem:[#allocation7] sm:$0x80] %vm1009, %v1007
    %1012 = vrot.lane.b32.xlu0 %v998, 96
    %v1013 = vpop.permute.xlu0 %1012
    %1015 = vst.msk [vmem:[#allocation7 + $0x1] sm:$0x80] %vm1009, %v1013
    // Predicated region
    $region18: #{tpu_custom_call.1} parent=1 // pred_check
      _
    $region19: #{tpu_custom_call.1} parent=1 // pred_check_branch
      %1017 = sbr.rel (0) target = $region21
    $region20: #{tpu_custom_call.1} parent=1 // pred_region
      %s1019 = ssub.s32 256, 256
      %1020 = vsyncadd [#allocation4], %s1019
      %s1021 = sshll.u32 [#allocation7], 4
      %s1022 = int_to_ptr.vmem [resolvable:$true] %s1021
      %1027 = dma.vmem_to_hbm [thread:$0]  %s1022, 256, %s2, [#allocation4], 128, 128, 8
    $region21: #{tpu_custom_call.1} parent=1 // pred_fallthru
      _
    // Predicated region
    $region22: #{tpu_custom_call.1} parent=1 // pred_check
      _
    $region23: #{tpu_custom_call.1} parent=1 // pred_check_branch
      %1029 = sbr.rel (0) target = $region25
    $region24: #{tpu_custom_call.1} parent=1 // pred_region
      %1030 = dma.done [#allocation4], 256
    $region25: #{tpu_custom_call.1} parent=1 // pred_fallthru
      _
    %1031 = vsyncpa [#allocation3], 1
    %1032 = vsyncpa [#allocation6], 1
    %1033 = vsyncpa [#allocation4], 1

</llo_original>
